<compile_context>
chip_gen: v7x
topology: tpu7x:2x2x1
jax: 0.10.0
libtpu: 0.0.40
codegen_flags: <defaults>
</compile_context>

<pallas_src>
import functools
import math

import jax
import jax.numpy as jnp
from jax.experimental import pallas as pl
from jax.experimental.pallas import tpu as pltpu

MIN_NORM = 1e-15      # geoopt MIN_NORM
ASIN_CLAMP = 1e-7     # geoopt arsin_k clamp for k > 0


def _round_up(n, m):
    return ((n + m - 1) // m) * m


def _asin_f32(x):
    """float32 arcsin via Cephes-style polynomial (only +, *, sqrt, select)."""
    a = jnp.abs(x)
    sgn = jnp.where(x < 0.0, -1.0, 1.0)
    big = a > 0.5
    z_big = 0.5 * (1.0 - a)
    x_big = jnp.sqrt(z_big)
    z_small = a * a
    z = jnp.where(big, z_big, z_small)
    t = jnp.where(big, x_big, a)
    p = ((((4.2163199048e-2 * z + 2.4181311049e-2) * z + 4.5470025998e-2) * z
          + 7.4953002686e-2) * z + 1.6666752422e-1) * z * t + t
    r = jnp.where(big, (math.pi / 2) - 2.0 * p, p)
    return sgn * r


def _dist2plane_kernel(x_ref, wp_ref, wa_ref, c_ref, o_ref, *, k, matmul_dtype):
    # x_ref : (TB, IN)  f32
    # wp_ref: (IN, TN)  matmul_dtype, columns = 2k * p_j
    # wa_ref: (IN, TN)  matmul_dtype, columns = (1+k||p_j||^2) * 2k/||a_j|| * a_j
    # c_ref : (8,  TN)  f32 packed per-plane constants
    x = x_ref[...]
    pp = c_ref[0:1, :]       # ||p||^2
    kpp2 = c_ref[1:2, :]     # k^2 ||p||^2
    b1k = c_ref[2:3, :]      # (1 + k||p||^2) / k
    b1sq = c_ref[3:4, :]     # (1 + k||p||^2)^2
    pac = c_ref[4:5, :]      # <p,a> * 2k/||a||
    esc = c_ref[5:6, :]      # exp(scale) / sqrt(k)

    # MXU: bf16 (or f32) inputs, f32 accumulation.
    xm = x.astype(matmul_dtype)
    tkpx = jnp.dot(xm, wp_ref[...], preferred_element_type=jnp.float32)  # 2k<x,p>
    bxa = jnp.dot(xm, wa_ref[...], preferred_element_type=jnp.float32)   # b1*coef*<x,a>
    xx = jnp.sum(x * x, axis=-1, keepdims=True)                          # (TB,1) f32

    # mobius_add(-p, x, k): diff = (-a1*p + b1*x) / denom_m   (never built)
    base = 1.0 + tkpx
    a1 = base - k * xx
    denom_m = jnp.maximum(base + kpp2 * xx, MIN_NORM)
    inv_dm = pl.reciprocal(denom_m, approx=True)
    inv_dm = inv_dm * (2.0 - denom_m * inv_dm)        # 1 Newton step -> ~f32 exact

    # ||diff||^2 and <diff, a> * 2k/||a|| (signed), via the expanded quadratic.
    d2 = (a1 * a1 * pp - a1 * b1k * tkpx + b1sq * xx) * (inv_dm * inv_dm)
    d2 = jnp.maximum(d2, MIN_NORM)
    sca_c = (bxa - a1 * pac) * inv_dm

    # arsin_k (k>0): asin(clip(2*sqrt_k*<diff,a>*sqrt_k / ((1+k*d2)*||a||))) / sqrt_k
    den_r = 1.0 + k * d2
    inv_r = pl.reciprocal(den_r, approx=True)
    inv_r = inv_r * (2.0 - den_r * inv_r)
    ratio = jnp.clip(sca_c * inv_r, -1.0 + ASIN_CLAMP, 1.0 - ASIN_CLAMP)
    o_ref[...] = (_asin_f32(ratio) * esc).astype(o_ref.dtype)


def mobius_dist2hyperplane(x, point, tangent, scale, *, k_module=-1.0,
                           block_b=None, block_n=None,
                           matmul_dtype=jnp.bfloat16, out_dtype=jnp.float32):
    """Pallas forward of MobiusDist2Hyperplane. x: (B, in_features)."""
    x = x.astype(jnp.float32)                  # fp64_hyper=False -> .float()
    point = point.astype(jnp.float32)
    tangent = tangent.astype(jnp.float32)
    scale = scale.astype(jnp.float32)

    B, IN = x.shape
    OUT = point.shape[0]

    k = abs(float(k_module))                   # k actually passed = ball.c > 0
    sqrt_k = math.sqrt(k + MIN_NORM)           # geoopt sabs(k).sqrt()

    # ---- tile selection ------------------------------------------------------
    if block_n is None:
        block_n = min(_round_up(OUT, 128), 1024)
    block_n = max(128, _round_up(block_n, 128))
    if block_b is None:
        # >= ~8 batch tiles (software pipelining; 2 TCs on v7x), capped at 512 rows.
        block_b = min(512, max(8, _round_up(-(-B // 8), 8)))
    block_b = max(8, _round_up(block_b, 8))

    w_isz = jnp.dtype(matmul_dtype).itemsize
    out_isz = jnp.dtype(out_dtype).itemsize

    def vmem_est(bb, bn):
        return (2 * bb * IN * 4              # x tile, double-buffered, f32
                + 2 * 2 * IN * bn * w_isz    # wp + wa tiles, double-buffered
                + 2 * 8 * bn * 4             # packed constants
                + 2 * bb * bn * out_isz)     # output tile

    VMEM_BUDGET = 40 << 20                   # leave headroom under the 48 MiB limit
    while vmem_est(block_b, block_n) > VMEM_BUDGET and block_b > 8:
        block_b = max(8, _round_up(block_b // 2, 8))
    while vmem_est(block_b, block_n) > VMEM_BUDGET and block_n > 128:
        block_n = max(128, _round_up(block_n // 2, 128))

    # Prefer a block_b that divides B exactly (skips the pad+slice HBM round trip).
    if B % block_b != 0 and B % 8 == 0:
        for bb in range(block_b, max(8, block_b // 2) - 1, -8):
            if B % bb == 0:
                block_b = bb
                break
    B_pad = _round_up(B, block_b)
    N = _round_up(OUT, block_n)              # lane-dense, divisible by block_n

    # ---- parameter-only precompute (hoisted out of the kernel) --------------
    pp = jnp.sum(point * point, axis=-1)                       # (OUT,) ||p||^2
    pa = jnp.sum(point * tangent, axis=-1)                     # (OUT,) <p,a>
    an = jnp.maximum(jnp.sqrt(jnp.sum(tangent * tangent, axis=-1)), MIN_NORM)
    b1 = 1.0 + k * pp
    coef = 2.0 * k / an

    def pad_row(v):
        return jnp.pad(v[None, :], ((0, 0), (0, N - OUT)))     # zero fill -> padded
                                                               # lanes stay finite/0
    consts = jnp.concatenate([
        pad_row(pp),                        # 0: ||p||^2
        pad_row((k * k) * pp),              # 1: k^2 ||p||^2
        pad_row(b1 / k),                    # 2: (1 + k||p||^2) / k
        pad_row(b1 * b1),                   # 3: (1 + k||p||^2)^2
        pad_row(pa * coef),                 # 4: <p,a> * 2k/||a||
        pad_row(jnp.exp(scale) / sqrt_k),   # 5: exp(scale)/sqrt(k)
        jnp.zeros((2, N), jnp.float32),     # 6-7: sublane padding
    ], axis=0)                              # (8, N)

    # Pre-scaled, pre-transposed weights (per-OUT-tile BlockSpec -> VMEM bounded).
    wp = jnp.pad((2.0 * k) * point.T, ((0, 0), (0, N - OUT))).astype(matmul_dtype)
    wa = jnp.pad(tangent.T * (b1 * coef)[None, :],
                 ((0, 0), (0, N - OUT))).astype(matmul_dtype)

    if B_pad != B:
        x = jnp.pad(x, ((0, B_pad - B), (0, 0)))   # zero rows -> finite junk, sliced off

    kernel = functools.partial(_dist2plane_kernel, k=k, matmul_dtype=matmul_dtype)

    out = pl.pallas_call(
        kernel,
        out_shape=jax.ShapeDtypeStruct((B_pad, N), out_dtype),
        grid_spec=pltpu.PrefetchScalarGridSpec(
            num_scalar_prefetch=0,
            grid=(B_pad // block_b, N // block_n),
            in_specs=[
                pl.BlockSpec((block_b, IN), lambda i, j: (i, 0)),     # x tile
                pl.BlockSpec((IN, block_n), lambda i, j: (0, j)),     # 2k * point^T
                pl.BlockSpec((IN, block_n), lambda i, j: (0, j)),     # scaled tangent^T
                pl.BlockSpec((8, block_n), lambda i, j: (0, j)),      # plane constants
            ],
            out_specs=pl.BlockSpec((block_b, block_n), lambda i, j: (i, j)),
        ),
        compiler_params=pltpu.CompilerParams(
            dimension_semantics=("parallel", "parallel"),
            vmem_limit_bytes=48 * 1024 * 1024,
        ),
    )(x, wp, wa, consts)

    return out[:B, :OUT]


def reference(x, point, tangent, scale, *, k_module=-1.0):
    """Pure-JAX transcription of geoopt dist2plane (broadcast form), for checking."""
    c = abs(float(k_module))
    x = x.astype(jnp.float32)[:, None, :]       # (B, 1, IN)  == input.unsqueeze(-2)
    p = point[None, :, :]
    a = tangent[None, :, :]
    mp = -p
    x2 = jnp.sum(mp * mp, axis=-1, keepdims=True)
    y2 = jnp.sum(x * x, axis=-1, keepdims=True)
    xy = jnp.sum(mp * x, axis=-1, keepdims=True)
    num = (1 - 2 * c * xy - c * y2) * mp + (1 + c * x2) * x
    denom = jnp.maximum(1 - 2 * c * xy + c * c * x2 * y2, MIN_NORM)
    diff = num / denom
    diff_norm2 = jnp.maximum(jnp.sum(diff * diff, axis=-1), MIN_NORM)
    sc_diff_a = jnp.sum(diff * a, axis=-1)
    a_norm = jnp.sqrt(jnp.sum(a * a, axis=-1))
    sk = math.sqrt(c + MIN_NORM)
    num_s = 2.0 * sk * sc_diff_a
    den_s = (1 + c * diff_norm2) * a_norm
    s = jnp.where(den_s >= 0, 1.0, -1.0)
    den_s = s * (jnp.abs(den_s) + MIN_NORM)
    ratio = jnp.clip((num_s / den_s) * sk, -1 + ASIN_CLAMP, 1 - ASIN_CLAMP)
    dist = jnp.arcsin(ratio) / sk
    return dist * jnp.exp(scale)[None, :]


if __name__ == "__main__":
    IN_FEATURES, OUT_FEATURES, BATCH = 32, 16, 16
    K_MODULE = -1.0

    key = jax.random.PRNGKey(0)
    k_p, k_t, k_x = jax.random.split(key, 3)

    # --- deterministic parameter init mirroring __init__ ---
    sqrt_abs_k = math.sqrt(abs(K_MODULE))
    point_raw = jax.random.normal(k_p, (OUT_FEATURES, IN_FEATURES), jnp.float32) / 4.0
    u_norm = jnp.maximum(
        jnp.sqrt(jnp.sum(point_raw * point_raw, axis=-1, keepdims=True)), MIN_NORM)
    point = jnp.tanh(sqrt_abs_k * u_norm) / sqrt_abs_k * point_raw / u_norm  # expmap0

    tangent_raw = jax.random.normal(k_t, (OUT_FEATURES, IN_FEATURES), jnp.float32)
    tangent = tangent_raw / jnp.sqrt(
        jnp.sum(tangent_raw * tangent_raw, axis=-1, keepdims=True))          # Sphere.proj_()

    scale = jnp.zeros((OUT_FEATURES,), jnp.float32)

    # --- input: points mapped onto the Poincare ball ---
    x_raw = jax.random.normal(k_x, (BATCH, IN_FEATURES), jnp.float32) * 0.5
    xn = jnp.maximum(jnp.sqrt(jnp.sum(x_raw * x_raw, axis=-1, keepdims=True)), MIN_NORM)
    x = jnp.tanh(sqrt_abs_k * xn) / sqrt_abs_k * x_raw / xn

    ref = reference(x, point, tangent, scale, k_module=K_MODULE)

    # Default path: bf16 MXU inputs, f32 accumulation, f32 tail (Newton-refined recips).
    out = mobius_dist2hyperplane(x, point, tangent, scale, k_module=K_MODULE)
    out = jax.block_until_ready(out)
    assert out.shape == (BATCH, OUT_FEATURES)
    assert bool(jnp.all(jnp.isfinite(out)))
    err_bf16 = float(jnp.max(jnp.abs(out - ref)))
    # bf16 rounding of the matmul inputs dominates the error at small IN; the
    # asin amplification near the ball boundary keeps it well under 3e-2 here.
    assert err_bf16 < 3e-2, err_bf16

    # Full-f32 matmul path (exactness check; reciprocals are Newton-refined).
    out_f32 = mobius_dist2hyperplane(x, point, tangent, scale, k_module=K_MODULE,
                                     matmul_dtype=jnp.float32)
    out_f32 = jax.block_until_ready(out_f32)
    err_f32 = float(jnp.max(jnp.abs(out_f32 - ref)))
    assert err_f32 < 5e-3, err_f32

    print("KERNEL_OK")
</pallas_src>

<mosaic_0001>
module attributes {stable_mosaic.version = 11 : i64} {
  func.func @_dist2plane_kernel(%arg0: i32, %arg1: i32, %arg2: memref<8x32xf32, #tpu.memory_space<vmem>>, %arg3: memref<32x128xbf16, #tpu.memory_space<vmem>>, %arg4: memref<32x128xbf16, #tpu.memory_space<vmem>>, %arg5: memref<8x128xf32, #tpu.memory_space<vmem>>, %arg6: memref<8x128xf32, #tpu.memory_space<vmem>>) attributes {dimension_semantics = [#tpu.dimension_semantics<parallel>, #tpu.dimension_semantics<parallel>], iteration_bounds = array<i64: 2, 1>, scalar_prefetch = 0 : i64, scratch_operands = 0 : i64, tpu.core_type = #tpu.core_type<tc>, window_params = [{transform_indices = @transform_0, window_bounds = array<i64: 8, 32>}, {transform_indices = @transform_1, window_bounds = array<i64: 32, 128>}, {transform_indices = @transform_2, window_bounds = array<i64: 32, 128>}, {transform_indices = @transform_3, window_bounds = array<i64: 8, 128>}, {transform_indices = @transform_4, window_bounds = array<i64: 8, 128>}]} {
    %c0 = arith.constant 0 : index
    %c0_0 = arith.constant 0 : index
    %0 = vector.load %arg2[%c0, %c0_0] : memref<8x32xf32, #tpu.memory_space<vmem>>, vector<8x32xf32>
    %c0_1 = arith.constant 0 : index
    %c0_2 = arith.constant 0 : index
    %1 = vector.load %arg5[%c0_1, %c0_2] : memref<8x128xf32, #tpu.memory_space<vmem>>, vector<1x128xf32>
    %c1 = arith.constant 1 : index
    %c0_3 = arith.constant 0 : index
    %2 = vector.load %arg5[%c1, %c0_3] : memref<8x128xf32, #tpu.memory_space<vmem>>, vector<1x128xf32>
    %c2 = arith.constant 2 : index
    %c0_4 = arith.constant 0 : index
    %3 = vector.load %arg5[%c2, %c0_4] : memref<8x128xf32, #tpu.memory_space<vmem>>, vector<1x128xf32>
    %c3 = arith.constant 3 : index
    %c0_5 = arith.constant 0 : index
    %4 = vector.load %arg5[%c3, %c0_5] : memref<8x128xf32, #tpu.memory_space<vmem>>, vector<1x128xf32>
    %c4 = arith.constant 4 : index
    %c0_6 = arith.constant 0 : index
    %5 = vector.load %arg5[%c4, %c0_6] : memref<8x128xf32, #tpu.memory_space<vmem>>, vector<1x128xf32>
    %c5 = arith.constant 5 : index
    %c0_7 = arith.constant 0 : index
    %6 = vector.load %arg5[%c5, %c0_7] : memref<8x128xf32, #tpu.memory_space<vmem>>, vector<1x128xf32>
    %7 = arith.truncf %0 : vector<8x32xf32> to vector<8x32xbf16>
    %c0_8 = arith.constant 0 : index
    %c0_9 = arith.constant 0 : index
    %8 = vector.load %arg3[%c0_8, %c0_9] : memref<32x128xbf16, #tpu.memory_space<vmem>>, vector<32x128xbf16>
    %cst = arith.constant dense<0.000000e+00> : vector<8x128xf32>
    %9 = tpu.matmul %7, %8, %cst {dimension_numbers = #tpu.dot_dimension_numbers<[1], [0], [0], [1], [0, 0, 1, 1], [], []>} : vector<8x32xbf16>, vector<32x128xbf16>, vector<8x128xf32> -> vector<8x128xf32>
    %c0_10 = arith.constant 0 : index
    %c0_11 = arith.constant 0 : index
    %10 = vector.load %arg4[%c0_10, %c0_11] : memref<32x128xbf16, #tpu.memory_space<vmem>>, vector<32x128xbf16>
    %cst_12 = arith.constant dense<0.000000e+00> : vector<8x128xf32>
    %11 = tpu.matmul %7, %10, %cst_12 {dimension_numbers = #tpu.dot_dimension_numbers<[1], [0], [0], [1], [0, 0, 1, 1], [], []>} : vector<8x32xbf16>, vector<32x128xbf16>, vector<8x128xf32> -> vector<8x128xf32>
    %12 = arith.mulf %0, %0 : vector<8x32xf32>
    %cst_13 = arith.constant dense<0.000000e+00> : vector<8xf32>
    %13 = vector.multi_reduction <add>, %12, %cst_13 [1] : vector<8x32xf32> to vector<8xf32>
    %14 = vector.shape_cast %13 : vector<8xf32> to vector<8x1xf32>
    %cst_14 = arith.constant 1.000000e+00 : f32
    %15 = vector.broadcast %cst_14 : f32 to vector<8x128xf32>
    %16 = arith.addf %15, %9 : vector<8x128xf32>
    %cst_15 = arith.constant 1.000000e+00 : f32
    %17 = vector.broadcast %cst_15 : f32 to vector<8x1xf32>
    %18 = arith.mulf %17, %14 : vector<8x1xf32>
    %19 = vector.broadcast %18 : vector<8x1xf32> to vector<8x128xf32>
    %20 = arith.subf %16, %19 : vector<8x128xf32>
    %21 = vector.broadcast %2 : vector<1x128xf32> to vector<8x128xf32>
    %22 = vector.broadcast %14 : vector<8x1xf32> to vector<8x128xf32>
    %23 = arith.mulf %21, %22 : vector<8x128xf32>
    %24 = arith.addf %16, %23 : vector<8x128xf32>
    %cst_16 = arith.constant 1.000000e-15 : f32
    %25 = vector.broadcast %cst_16 : f32 to vector<8x128xf32>
    %26 = arith.maximumf %24, %25 : vector<8x128xf32>
    %27 = tpu.reciprocal %26 {approx = true} : vector<8x128xf32> -> vector<8x128xf32>
    %28 = arith.mulf %26, %27 : vector<8x128xf32>
    %cst_17 = arith.constant 2.000000e+00 : f32
    %29 = vector.broadcast %cst_17 : f32 to vector<8x128xf32>
    %30 = arith.subf %29, %28 : vector<8x128xf32>
    %31 = arith.mulf %27, %30 : vector<8x128xf32>
    %32 = arith.mulf %20, %20 : vector<8x128xf32>
    %33 = vector.broadcast %1 : vector<1x128xf32> to vector<8x128xf32>
    %34 = arith.mulf %32, %33 : vector<8x128xf32>
    %35 = vector.broadcast %3 : vector<1x128xf32> to vector<8x128xf32>
    %36 = arith.mulf %20, %35 : vector<8x128xf32>
    %37 = arith.mulf %36, %9 : vector<8x128xf32>
    %38 = arith.subf %34, %37 : vector<8x128xf32>
    %39 = vector.broadcast %4 : vector<1x128xf32> to vector<8x128xf32>
    %40 = vector.broadcast %14 : vector<8x1xf32> to vector<8x128xf32>
    %41 = arith.mulf %39, %40 : vector<8x128xf32>
    %42 = arith.addf %38, %41 : vector<8x128xf32>
    %43 = arith.mulf %31, %31 : vector<8x128xf32>
    %44 = arith.mulf %42, %43 : vector<8x128xf32>
    %cst_18 = arith.constant 1.000000e-15 : f32
    %45 = vector.broadcast %cst_18 : f32 to vector<8x128xf32>
    %46 = arith.maximumf %44, %45 : vector<8x128xf32>
    %47 = vector.broadcast %5 : vector<1x128xf32> to vector<8x128xf32>
    %48 = arith.mulf %20, %47 : vector<8x128xf32>
    %49 = arith.subf %11, %48 : vector<8x128xf32>
    %50 = arith.mulf %49, %31 : vector<8x128xf32>
    %cst_19 = arith.constant 1.000000e+00 : f32
    %51 = vector.broadcast %cst_19 : f32 to vector<8x128xf32>
    %52 = arith.mulf %51, %46 : vector<8x128xf32>
    %cst_20 = arith.constant 1.000000e+00 : f32
    %53 = vector.broadcast %cst_20 : f32 to vector<8x128xf32>
    %54 = arith.addf %53, %52 : vector<8x128xf32>
    %55 = tpu.reciprocal %54 {approx = true} : vector<8x128xf32> -> vector<8x128xf32>
    %56 = arith.mulf %54, %55 : vector<8x128xf32>
    %cst_21 = arith.constant 2.000000e+00 : f32
    %57 = vector.broadcast %cst_21 : f32 to vector<8x128xf32>
    %58 = arith.subf %57, %56 : vector<8x128xf32>
    %59 = arith.mulf %55, %58 : vector<8x128xf32>
    %60 = arith.mulf %50, %59 : vector<8x128xf32>
    %cst_22 = arith.constant -0.99999988 : f32
    %cst_23 = arith.constant 0.99999988 : f32
    %61 = vector.broadcast %cst_22 : f32 to vector<8x128xf32>
    %62 = arith.maximumf %61, %60 : vector<8x128xf32>
    %63 = vector.broadcast %cst_23 : f32 to vector<8x128xf32>
    %64 = arith.minimumf %63, %62 : vector<8x128xf32>
    %65 = math.absf %64 : vector<8x128xf32>
    %cst_24 = arith.constant 0.000000e+00 : f32
    %66 = vector.broadcast %cst_24 : f32 to vector<8x128xf32>
    %67 = arith.cmpf olt, %64, %66 : vector<8x128xf32>
    %cst_25 = arith.constant -1.000000e+00 : f32
    %cst_26 = arith.constant 1.000000e+00 : f32
    %68 = vector.broadcast %cst_25 : f32 to vector<8x128xf32>
    %69 = vector.broadcast %cst_26 : f32 to vector<8x128xf32>
    %70 = arith.select %67, %68, %69 : vector<8x128xi1>, vector<8x128xf32>
    %cst_27 = arith.constant 5.000000e-01 : f32
    %71 = vector.broadcast %cst_27 : f32 to vector<8x128xf32>
    %72 = arith.cmpf ogt, %65, %71 : vector<8x128xf32>
    %cst_28 = arith.constant 1.000000e+00 : f32
    %73 = vector.broadcast %cst_28 : f32 to vector<8x128xf32>
    %74 = arith.subf %73, %65 : vector<8x128xf32>
    %cst_29 = arith.constant 5.000000e-01 : f32
    %75 = vector.broadcast %cst_29 : f32 to vector<8x128xf32>
    %76 = arith.mulf %75, %74 : vector<8x128xf32>
    %77 = math.sqrt %76 : vector<8x128xf32>
    %78 = arith.mulf %65, %65 : vector<8x128xf32>
    %79 = arith.select %72, %76, %78 : vector<8x128xi1>, vector<8x128xf32>
    %80 = arith.select %72, %77, %65 : vector<8x128xi1>, vector<8x128xf32>
    %cst_30 = arith.constant 4.216320e-02 : f32
    %81 = vector.broadcast %cst_30 : f32 to vector<8x128xf32>
    %82 = arith.mulf %81, %79 : vector<8x128xf32>
    %cst_31 = arith.constant 0.024181312 : f32
    %83 = vector.broadcast %cst_31 : f32 to vector<8x128xf32>
    %84 = arith.addf %82, %83 : vector<8x128xf32>
    %85 = arith.mulf %84, %79 : vector<8x128xf32>
    %cst_32 = arith.constant 0.0454700254 : f32
    %86 = vector.broadcast %cst_32 : f32 to vector<8x128xf32>
    %87 = arith.addf %85, %86 : vector<8x128xf32>
    %88 = arith.mulf %87, %79 : vector<8x128xf32>
    %cst_33 = arith.constant 0.0749530047 : f32
    %89 = vector.broadcast %cst_33 : f32 to vector<8x128xf32>
    %90 = arith.addf %88, %89 : vector<8x128xf32>
    %91 = arith.mulf %90, %79 : vector<8x128xf32>
    %cst_34 = arith.constant 0.166667521 : f32
    %92 = vector.broadcast %cst_34 : f32 to vector<8x128xf32>
    %93 = arith.addf %91, %92 : vector<8x128xf32>
    %94 = arith.mulf %93, %79 : vector<8x128xf32>
    %95 = arith.mulf %94, %80 : vector<8x128xf32>
    %96 = arith.addf %95, %80 : vector<8x128xf32>
    %cst_35 = arith.constant 2.000000e+00 : f32
    %97 = vector.broadcast %cst_35 : f32 to vector<8x128xf32>
    %98 = arith.mulf %97, %96 : vector<8x128xf32>
    %cst_36 = arith.constant 1.57079637 : f32
    %99 = vector.broadcast %cst_36 : f32 to vector<8x128xf32>
    %100 = arith.subf %99, %98 : vector<8x128xf32>
    %101 = arith.select %72, %100, %96 : vector<8x128xi1>, vector<8x128xf32>
    %102 = arith.mulf %70, %101 : vector<8x128xf32>
    %103 = vector.broadcast %6 : vector<1x128xf32> to vector<8x128xf32>
    %104 = arith.mulf %102, %103 : vector<8x128xf32>
    %c0_37 = arith.constant 0 : index
    %c0_38 = arith.constant 0 : index
    %105 = vector.load %arg6[%c0_37, %c0_38] : memref<8x128xf32, #tpu.memory_space<vmem>>, vector<8x128xf32>
    tpu.vector_store %arg6[%c0_37, %c0_38], %104 {strides = array<i32>} : memref<8x128xf32, #tpu.memory_space<vmem>>, vector<8x128xf32>,
    return
  }
  func.func @transform_0(%arg0: i32, %arg1: i32) -> (i32, i32) {
    %c0_i32 = arith.constant 0 : i32
    %c0_i32_0 = arith.constant 0 : i32
    return %arg0, %c0_i32 : i32, i32
  }
  func.func @transform_1(%arg0: i32, %arg1: i32) -> (i32, i32) {
    %c0_i32 = arith.constant 0 : i32
    %c0_i32_0 = arith.constant 0 : i32
    return %c0_i32, %arg1 : i32, i32
  }
  func.func @transform_2(%arg0: i32, %arg1: i32) -> (i32, i32) {
    %c0_i32 = arith.constant 0 : i32
    %c0_i32_0 = arith.constant 0 : i32
    return %c0_i32, %arg1 : i32, i32
  }
  func.func @transform_3(%arg0: i32, %arg1: i32) -> (i32, i32) {
    %c0_i32 = arith.constant 0 : i32
    %c0_i32_0 = arith.constant 0 : i32
    return %c0_i32, %arg1 : i32, i32
  }
  func.func @transform_4(%arg0: i32, %arg1: i32) -> (i32, i32) {
    %c0_i32 = arith.constant 0 : i32
    return %arg0, %arg1 : i32, i32
  }
}

</mosaic_0001>

<llo_original>
// kernel: tpu_custom_call.1
$region0: #{tpu_custom_call.1}
  #allocation0 [shape = 'u32[]', space=smem, size = 0x4, offset = 0x4, fixed_abs, tag = 'smem constant byte address 0x4 - core index']
  #allocation1 [shape = 'u32[144,128]{1,0:T(1,128)}', space=vmem, size = 0x12000, scoped, tag = 'internal scratch']
  %s0 = inlined_call_operand.hbm [shape: f32[16,32], index: 0, kind: input, shape index: {}]
  %s1 = inlined_call_operand.hbm [shape: bf16[32,128], index: 1, kind: input, shape index: {}]
  %s2 = inlined_call_operand.hbm [shape: bf16[32,128], index: 2, kind: input, shape index: {}]
  %s3 = inlined_call_operand.vmem [shape: f32[8,128], index: 3, kind: input, shape index: {}]
  %s4 = inlined_call_operand.hbm [shape: f32[16,128], index: 4, kind: output, shape index: {}]
  %s5 = sld [smem:[#allocation0]]
  $region61: #{tpu_custom_call.1} parent=0
    _
  %s7 = ssub.s32 1, %s5
  %s8 = scalar_select 0, %s7, %s5
  $region1: #{tpu_custom_call.1} parent=0
    #allocation2 [shape = 'u8[8192]{0}', space=vmem, size = 0x2000, scoped, tag = 'input window, operand 0']
    #allocation3 [shape = 's32[2]{0}', space=sflag, size = 0x8, scoped, tag = 'scoped memory for tpu_custom_call.1']
    #allocation4 [shape = 's32[2]{0}', space=sflag, size = 0x8, scoped, tag = 'scoped memory for tpu_custom_call.1']
    #allocation5 [shape = 'u8[8192]{0}', space=vmem, size = 0x2000, scoped, tag = 'input window, operand 1, single buffered']
    #allocation6 [shape = 's32[1]{0}', space=sflag, size = 0x4, scoped, tag = 'scoped memory for tpu_custom_call.1']
    #allocation7 [shape = 'u8[8192]{0}', space=vmem, size = 0x2000, scoped, tag = 'input window, operand 2, single buffered']
    #allocation8 [shape = 'u8[8192]{0}', space=vmem, size = 0x2000, scoped, tag = 'output window, operand 0']
    %9 = vsyncpa [#allocation3], 0
    %s10 = scalar_lea.sflag [#allocation3], 1
    %11 = vsyncpa %s10, 0
    %12 = vsyncpa [#allocation6], 0
    %13 = vsyncpa [#allocation4], 0
    %s14 = scalar_lea.sflag [#allocation4], 1
    %15 = vsyncpa %s14, 0
    loop: start=0, step=1, limit=4
    $region2: #{tpu_custom_call.1} parent=1 // loop_pre_header
      _
    $region3: #{tpu_custom_call.1} parent=1 // loop_header
      %s17 = sphi 0, %s21
      %p18 = scmp.ge.s32.totalorder %s17, 4
      %s24 = sphi 0, %s36
      %s25 = sphi 0, %s32
      %s26 = sphi 0, %s24
      %s27 = sphi 0, %s25
      %s28 = sphi 0, %s26
      %s29 = sphi 0, %s27
      %s39 = sphi 0, %s41
      %s42 = sphi 0, %s39
      %s43 = sphi 0, %s42
      %s59 = sphi 0, %s43
      %s65 = sphi 0, %s67
      %s68 = sphi 0, %s65
      %s69 = sphi 0, %s68
      %s85 = sphi 0, %s69
      %s91 = sphi 0, %s93
      %s94 = sphi 0, %s91
      %s95 = sphi 0, %s94
      %s111 = sphi 0, %s95
      %s117 = sphi 0, %s119
      %s120 = sphi 0, %s117
      %s121 = sphi 0, %s120
      %s137 = sphi 0, %s121
      %s145 = sphi 0, %s147
      %s148 = sphi 0, %s145
      %s149 = sphi 0, %s148
      %s165 = sphi 0, %s149
    $region4: #{tpu_custom_call.1} parent=1 // loop_header_branch
      %20 = sbr.rel (%p18) target = $region8
    $region5: #{tpu_custom_call.1} parent=1 // loop_body
      %s22 = ssub.s32 %s17, 1
      %s23 = ssub.s32 %s17, 2
      %s30 = sadd.s32 1, %s25
      %p31 = scmp.ge.s32.totalorder %s30, 1
      %s32 = scalar_select %p31, 0, %s30
      %s33 = sadd.s32 1, %s24
      %s34 = scalar_select %p31, %s33, %s24
      %p35 = scmp.ge.s32.totalorder %s34, 2
      %s36 = scalar_select %p35, 0, %s34
      %s37 = ssub.s32 %s24, %s36
      %p38 = scmp.eq.s32.totalorder %s37, 0
      %s40 = sadd.s32 %s39, 1
      %s41 = scalar_select %p38, %s39, %s40
      %p44 = pneg %p38
      %p45 = scmp.eq.s32.totalorder %s17, 1
      %p46 = por %p44, %p45
      %p47 = scmp.ne.s32.totalorder %s39, %s42
      %p48 = scmp.eq.s32.totalorder %s17, 0
      %p49 = por %p47, %p48
      %p50 = scmp.ne.s32.totalorder %s39, %s42
      %p51 = scmp.eq.s32.totalorder %s22, 1
      %p52 = por %p50, %p51
      %p53 = scmp.ne.s32.totalorder %s42, %s43
      %p54 = scmp.eq.s32.totalorder %s22, 0
      %p55 = por %p53, %p54
      %p56 = scmp.ne.s32.totalorder %s42, %s43
      %p57 = scmp.eq.s32.totalorder %s23, 1
      %p58 = por %p56, %p57
      %p60 = scmp.ne.s32.totalorder %s43, %s59
      %p61 = scmp.eq.s32.totalorder %s23, 0
      %p62 = por %p60, %p61
      %s63 = ssub.s32 %s25, %s32
      %p64 = scmp.eq.s32.totalorder %s63, 0
      %s66 = sadd.s32 %s65, 1
      %s67 = scalar_select %p64, %s65, %s66
      %p70 = pneg %p64
      %p71 = scmp.eq.s32.totalorder %s17, 1
      %p72 = por %p70, %p71
      %p73 = scmp.ne.s32.totalorder %s65, %s68
      %p74 = scmp.eq.s32.totalorder %s17, 0
      %p75 = por %p73, %p74
      %p76 = scmp.ne.s32.totalorder %s65, %s68
      %p77 = scmp.eq.s32.totalorder %s22, 1
      %p78 = por %p76, %p77
      %p79 = scmp.ne.s32.totalorder %s68, %s69
      %p80 = scmp.eq.s32.totalorder %s22, 0
      %p81 = por %p79, %p80
      %p82 = scmp.ne.s32.totalorder %s68, %s69
      %p83 = scmp.eq.s32.totalorder %s23, 1
      %p84 = por %p82, %p83
      %p86 = scmp.ne.s32.totalorder %s69, %s85
      %p87 = scmp.eq.s32.totalorder %s23, 0
      %p88 = por %p86, %p87
      %s89 = ssub.s32 %s25, %s32
      %p90 = scmp.eq.s32.totalorder %s89, 0
      %s92 = sadd.s32 %s91, 1
      %s93 = scalar_select %p90, %s91, %s92
      %p96 = pneg %p90
      %p97 = scmp.eq.s32.totalorder %s17, 1
      %p98 = por %p96, %p97
      %p99 = scmp.ne.s32.totalorder %s91, %s94
      %p100 = scmp.eq.s32.totalorder %s17, 0
      %p101 = por %p99, %p100
      %p102 = scmp.ne.s32.totalorder %s91, %s94
      %p103 = scmp.eq.s32.totalorder %s22, 1
      %p104 = por %p102, %p103
      %p105 = scmp.ne.s32.totalorder %s94, %s95
      %p106 = scmp.eq.s32.totalorder %s22, 0
      %p107 = por %p105, %p106
      %p108 = scmp.ne.s32.totalorder %s94, %s95
      %p109 = scmp.eq.s32.totalorder %s23, 1
      %p110 = por %p108, %p109
      %p112 = scmp.ne.s32.totalorder %s95, %s111
      %p113 = scmp.eq.s32.totalorder %s23, 0
      %p114 = por %p112, %p113
      %s115 = ssub.s32 %s25, %s32
      %p116 = scmp.eq.s32.totalorder %s115, 0
      %s118 = sadd.s32 %s117, 1
      %s119 = scalar_select %p116, %s117, %s118
      %p122 = pneg %p116
      %p123 = scmp.eq.s32.totalorder %s17, 1
      %p124 = por %p122, %p123
      %p125 = scmp.ne.s32.totalorder %s117, %s120
      %p126 = scmp.eq.s32.totalorder %s17, 0
      %p127 = por %p125, %p126
      %p128 = scmp.ne.s32.totalorder %s117, %s120
      %p129 = scmp.eq.s32.totalorder %s22, 1
      %p130 = por %p128, %p129
      %p131 = scmp.ne.s32.totalorder %s120, %s121
      %p132 = scmp.eq.s32.totalorder %s22, 0
      %p133 = por %p131, %p132
      %p134 = scmp.ne.s32.totalorder %s120, %s121
      %p135 = scmp.eq.s32.totalorder %s23, 1
      %p136 = por %p134, %p135
      %p138 = scmp.ne.s32.totalorder %s121, %s137
      %p139 = scmp.eq.s32.totalorder %s23, 0
      %p140 = por %p138, %p139
      %s141 = ssub.s32 %s24, %s36
      %s142 = ssub.s32 %s25, %s32
      %s143 = sor.u32 %s141, %s142
      %p144 = scmp.eq.s32.totalorder %s143, 0
      %s146 = sadd.s32 %s145, 1
      %s147 = scalar_select %p144, %s145, %s146
      %p150 = pneg %p144
      %p151 = scmp.eq.s32.totalorder %s17, 1
      %p152 = por %p150, %p151
      %p153 = scmp.ne.s32.totalorder %s145, %s148
      %p154 = scmp.eq.s32.totalorder %s17, 0
      %p155 = por %p153, %p154
      %p156 = scmp.ne.s32.totalorder %s145, %s148
      %p157 = scmp.eq.s32.totalorder %s22, 1
      %p158 = por %p156, %p157
      %p159 = scmp.ne.s32.totalorder %s148, %s149
      %p160 = scmp.eq.s32.totalorder %s22, 0
      %p161 = por %p159, %p160
      %p162 = scmp.ne.s32.totalorder %s148, %s149
      %p163 = scmp.eq.s32.totalorder %s23, 1
      %p164 = por %p162, %p163
      %p166 = scmp.ne.s32.totalorder %s149, %s165
      %p167 = scmp.eq.s32.totalorder %s23, 0
      %p168 = por %p166, %p167
      %p169 = scmp.le.s32.totalorder 1, %s17
      %p170 = scmp.lt.s32.totalorder %s17, 3
      %p171 = pnand %p169, %p170
      %p172 = pneg %p171
      // Predicated region
      $region9: #{tpu_custom_call.1} parent=5 // pred_check
        _
      $region10: #{tpu_custom_call.1} parent=5 // pred_check_branch
        %174 = sbr.rel (%p171) target = $region12
      $region11: #{tpu_custom_call.1} parent=5 // pred_region
        %s175 = ssub.s32 %s17, 1
        // Predicated region
        $region13: #{tpu_custom_call.1} parent=11 // pred_check
          %p176 = pneg %p81
        $region14: #{tpu_custom_call.1} parent=11 // pred_check_branch
          %178 = sbr.rel (%p176) target = $region16
        $region15: #{tpu_custom_call.1} parent=11 // pred_region
          %s180 = ssub.s32 256, 256
          %181 = vsyncadd [#allocation6], %s180
          %s182 = smul.addr %s27, 64
          %s183 = scalar_lea.hbm %s1, %s182
          %s184 = sshll.u32 [#allocation5], 4
          %s185 = int_to_ptr.vmem [resolvable:$true] %s184
          %190 = dma.hbm_to_vmem [thread:$0]  %s183, 256, %s185, [#allocation6], 64, 64, 4
        $region16: #{tpu_custom_call.1} parent=11 // pred_fallthru
          _
        // Predicated region
        $region17: #{tpu_custom_call.1} parent=11 // pred_check
          %p191 = pneg %p107
        $region18: #{tpu_custom_call.1} parent=11 // pred_check_branch
          %193 = sbr.rel (%p191) target = $region20
        $region19: #{tpu_custom_call.1} parent=11 // pred_region
          %s195 = ssub.s32 256, 256
          %196 = vsyncadd [#allocation6], %s195
          %s197 = smul.addr %s27, 64
          %s198 = scalar_lea.hbm %s2, %s197
          %s199 = sshll.u32 [#allocation7], 4
          %s200 = int_to_ptr.vmem [resolvable:$true] %s199
          %205 = dma.hbm_to_vmem [thread:$0]  %s198, 256, %s200, [#allocation6], 64, 64, 4
        $region20: #{tpu_custom_call.1} parent=11 // pred_fallthru
          _
        // Predicated region
        $region21: #{tpu_custom_call.1} parent=11 // pred_check
          %p206 = pneg %p133
        $region22: #{tpu_custom_call.1} parent=11 // pred_check_branch
          %208 = sbr.rel (%p206) target = $region24
        $region23: #{tpu_custom_call.1} parent=11 // pred_region
          %p209 = scmp.lt.s32.totalorder %s27, 0
          %s210 = scalar_select %p209, %s27, 0
          %s211 = smul.addr %s210, 8
          %s212 = scalar_lea.vmem %s3, %s211
        $region24: #{tpu_custom_call.1} parent=11 // pred_fallthru
          _
      $region12: #{tpu_custom_call.1} parent=5 // pred_fallthru
        _
      %p213 = scmp.lt.s32.totalorder %s17, 2
      // Predicated region
      $region25: #{tpu_custom_call.1} parent=5 // pred_check
        %p214 = pneg %p213
      $region26: #{tpu_custom_call.1} parent=5 // pred_check_branch
        %216 = sbr.rel (%p214) target = $region28
      $region27: #{tpu_custom_call.1} parent=5 // pred_region
        // Predicated region
        $region29: #{tpu_custom_call.1} parent=27 // pred_check
          %p217 = pneg %p49
        $region30: #{tpu_custom_call.1} parent=27 // pred_check_branch
          %219 = sbr.rel (%p217) target = $region32
        $region31: #{tpu_custom_call.1} parent=27 // pred_region
          %s220 = sand.u32 %s39, 1
          %s221 = scalar_lea.sflag [#allocation3], %s220
          %s222 = sand.u32 %s39, 1
          %s223 = smul.addr %s222, 8
          %s224 = scalar_lea.vmem [#allocation2], %s223
          %s226 = ssub.s32 128, 128
          %227 = vsyncadd %s221, %s226
          %s228 = smul.addr %s24, 128
          %s229 = scalar_lea.hbm %s0, %s228
          %s231 = sshll.u32 %s224, 4
          %s232 = int_to_ptr.vmem [resolvable:$true] %s231
          %234 = dma.hbm_to_vmem [thread:$0]  %s229, 128, %s232, %s221
        $region32: #{tpu_custom_call.1} parent=27 // pred_fallthru
          _
      $region28: #{tpu_custom_call.1} parent=5 // pred_fallthru
        _
      %p235 = scmp.le.s32.totalorder 1, %s17
      %p236 = scmp.lt.s32.totalorder %s17, 3
      %p237 = pnand %p235, %p236
      %p238 = pneg %p237
      // Predicated region
      $region33: #{tpu_custom_call.1} parent=5 // pred_check
        _
      $region34: #{tpu_custom_call.1} parent=5 // pred_check_branch
        %240 = sbr.rel (%p237) target = $region36
      $region35: #{tpu_custom_call.1} parent=5 // pred_region
        %s241 = ssub.s32 %s17, 1
        %s242 = sand.u32 %s42, 1
        %s243 = scalar_lea.sflag [#allocation3], %s242
        %s244 = sand.u32 %s42, 1
        %s245 = smul.addr %s244, 8
        %s246 = scalar_lea.vmem [#allocation2], %s245
        // Predicated region
        $region37: #{tpu_custom_call.1} parent=35 // pred_check
          %p247 = pneg %p55
        $region38: #{tpu_custom_call.1} parent=35 // pred_check_branch
          %249 = sbr.rel (%p247) target = $region40
        $region39: #{tpu_custom_call.1} parent=35 // pred_region
          %250 = dma.done %s243, 128
        $region40: #{tpu_custom_call.1} parent=35 // pred_fallthru
          _
        // Predicated region
        $region41: #{tpu_custom_call.1} parent=35 // pred_check
          %p251 = pneg %p81
        $region42: #{tpu_custom_call.1} parent=35 // pred_check_branch
          %253 = sbr.rel (%p251) target = $region44
        $region43: #{tpu_custom_call.1} parent=35 // pred_region
          %254 = dma.done [#allocation6], 256
        $region44: #{tpu_custom_call.1} parent=35 // pred_fallthru
          _
        // Predicated region
        $region45: #{tpu_custom_call.1} parent=35 // pred_check
          %p255 = pneg %p107
        $region46: #{tpu_custom_call.1} parent=35 // pred_check_branch
          %257 = sbr.rel (%p255) target = $region48
        $region47: #{tpu_custom_call.1} parent=35 // pred_region
          %258 = dma.done [#allocation6], 256
        $region48: #{tpu_custom_call.1} parent=35 // pred_fallthru
          _
        %s259 = sand.u32 %s42, 1
        %s260 = scalar_lea.sflag [#allocation3], %s259
        %s261 = sand.u32 %s42, 1
        %s262 = smul.addr %s261, 8
        %s263 = scalar_lea.vmem [#allocation2], %s262
        %p264 = pneg %p55
        %p265 = pneg %p52
        %p266 = pneg %p81
        %p267 = pneg %p78
        %p268 = pneg %p107
        %p269 = pneg %p104
        %p270 = scmp.lt.s32.totalorder %s27, 0
        %s271 = scalar_select %p270, %s27, 0
        %s272 = smul.addr %s271, 8
        %s273 = scalar_lea.vmem %s3, %s272
        %p274 = pneg %p133
        %p275 = pneg %p130
        %p276 = pneg %p161
        %p277 = pneg %p158
        %s278 = sand.u32 %s148, 1
        %s279 = scalar_lea.sflag [#allocation4], %s278
        %s280 = sand.u32 %s148, 1
        %s281 = smul.addr %s280, 8
        %s282 = scalar_lea.vmem [#allocation8], %s281
        %p283 = scmp.lt.s32.totalorder %s27, 0
        %s284 = scalar_select %p283, %s27, 0
        %s285 = smul.addr %s284, 8
        %s286 = scalar_lea.vmem %s3, %s285
        %v288 = vld [vmem:[%s246] sm:$0xff]
        %v289 = vld [vmem:[%s286] sm:$0x1]
        %v290 = vld [vmem:[%s286 + $0x1] sm:$0x1]
        %v291 = vld [vmem:[%s286 + $0x2] sm:$0x1]
        %v292 = vld [vmem:[%s286 + $0x3] sm:$0x1]
        %v293 = vld [vmem:[%s286 + $0x4] sm:$0x1]
        %v294 = vld [vmem:[%s286 + $0x5] sm:$0x1]
        %v295 = vpack.c.bf16 %v288, %v288
        %v296 = vld [vmem:[#allocation5] sm:$0xf]
        %v297 = vld [vmem:[#allocation5 + $0x4] sm:$0xf]
        %v298 = vld [vmem:[#allocation5 + $0x8] sm:$0xf]
        %v299 = vld [vmem:[#allocation5 + $0xc] sm:$0xf]
        %v304 = vunpack.c.l.b16 %v296
        %v305 = vunpack.c.l.b16 %v297
        %v306 = vunpack.c.l.b16 %v298
        %v307 = vunpack.c.l.b16 %v299
        %v308 = vpack.c.b16 %v305, %v304
        %v309 = vpack.c.b16 %v307, %v306
        %vm312 = vcmask 261120
        %v314 = vsel %vm312, %v295, 0
        %316 = vmatprep.subr.bf16.mxu0 0
        %317 = vmatpush1.bf16.msra.mxu0 %v308
        %318 = vmatprep.subr.bf16.mxu0 0
        %319 = vmatpush1.bf16.msra.mxu0 %v309
        %320 = vmatprep.subr.bf16.mxu0 0
        %321 = vmatpush1.bf16.msra.mxu0 0
        %322 = vmatprep.subr.bf16.mxu0 0
        %323 = vmatpush1.bf16.msra.mxu0 0
        %324 = vmatprep.subr.bf16.mxu0 0
        %325 = vmatpush1.bf16.msra.mxu0 0
        %326 = vmatprep.subr.bf16.mxu0 0
        %327 = vmatpush1.bf16.msra.mxu0 0
        %328 = vmatprep.subr.bf16.mxu0 0
        %329 = vmatpush1.bf16.msra.mxu0 0
        %330 = vmatprep.subr.bf16.mxu0 0
        %331 = vmatpush1.bf16.msra.mxu0 0
        %332 = vmatprep.subr.bf16.mxu0 0
        %333 = vmatpush1.bf16.msra.mxu0 0
        %334 = vmatprep.subr.bf16.mxu0 0
        %335 = vmatpush1.bf16.msra.mxu0 0
        %336 = vmatprep.subr.bf16.mxu0 0
        %337 = vmatpush1.bf16.msra.mxu0 0
        %338 = vmatprep.subr.bf16.mxu0 0
        %339 = vmatpush1.bf16.msra.mxu0 0
        %340 = vmatprep.subr.bf16.mxu0 0
        %341 = vmatpush1.bf16.msra.mxu0 0
        %342 = vmatprep.subr.bf16.mxu0 0
        %343 = vmatpush1.bf16.msra.mxu0 0
        %344 = vmatprep.subr.bf16.mxu0 0
        %345 = vmatpush1.bf16.msra.mxu0 0
        %346 = vmatprep.subr.bf16.mxu0 0
        %347 = vmatpush1.bf16.msra.mxu0 0
        %348 = vmatprep.mubr.bf16.mxu0 0
        %349 = vmatmul.mubr.bf16.gmra.mrb[0].mxu0 %v314
        %v350 = vpop.f32.mrb[0].mxu0
        %v351 = vadd.f32 0.0, %v350
        %v352 = vpop.f32.mrb[0].mxu0
        %v353 = vpop.f32.mrb[0].mxu0
        %v354 = vpop.f32.mrb[0].mxu0
        %355 = vdwg.mxu0
        %v356 = vld [vmem:[#allocation7] sm:$0xf]
        %v357 = vld [vmem:[#allocation7 + $0x4] sm:$0xf]
        %v358 = vld [vmem:[#allocation7 + $0x8] sm:$0xf]
        %v359 = vld [vmem:[#allocation7 + $0xc] sm:$0xf]
        %v364 = vunpack.c.l.b16 %v356
        %v365 = vunpack.c.l.b16 %v357
        %v366 = vunpack.c.l.b16 %v358
        %v367 = vunpack.c.l.b16 %v359
        %v368 = vpack.c.b16 %v365, %v364
        %v369 = vpack.c.b16 %v367, %v366
        %372 = vmatprep.subr.bf16.mxu0 0
        %373 = vmatpush1.bf16.msra.mxu0 %v368
        %374 = vmatprep.subr.bf16.mxu0 0
        %375 = vmatpush1.bf16.msra.mxu0 %v369
        %376 = vmatprep.subr.bf16.mxu0 0
        %377 = vmatpush1.bf16.msra.mxu0 0
        %378 = vmatprep.subr.bf16.mxu0 0
        %379 = vmatpush1.bf16.msra.mxu0 0
        %380 = vmatprep.subr.bf16.mxu0 0
        %381 = vmatpush1.bf16.msra.mxu0 0
        %382 = vmatprep.subr.bf16.mxu0 0
        %383 = vmatpush1.bf16.msra.mxu0 0
        %384 = vmatprep.subr.bf16.mxu0 0
        %385 = vmatpush1.bf16.msra.mxu0 0
        %386 = vmatprep.subr.bf16.mxu0 0
        %387 = vmatpush1.bf16.msra.mxu0 0
        %388 = vmatprep.subr.bf16.mxu0 0
        %389 = vmatpush1.bf16.msra.mxu0 0
        %390 = vmatprep.subr.bf16.mxu0 0
        %391 = vmatpush1.bf16.msra.mxu0 0
        %392 = vmatprep.subr.bf16.mxu0 0
        %393 = vmatpush1.bf16.msra.mxu0 0
        %394 = vmatprep.subr.bf16.mxu0 0
        %395 = vmatpush1.bf16.msra.mxu0 0
        %396 = vmatprep.subr.bf16.mxu0 0
        %397 = vmatpush1.bf16.msra.mxu0 0
        %398 = vmatprep.subr.bf16.mxu0 0
        %399 = vmatpush1.bf16.msra.mxu0 0
        %400 = vmatprep.subr.bf16.mxu0 0
        %401 = vmatpush1.bf16.msra.mxu0 0
        %402 = vmatprep.subr.bf16.mxu0 0
        %403 = vmatpush1.bf16.msra.mxu0 0
        %404 = vmatprep.mubr.bf16.mxu0 0
        %405 = vmatmul.mubr.bf16.gmra.mrb[0].mxu0 %v314
        %v406 = vpop.f32.mrb[0].mxu0
        %v407 = vadd.f32 0.0, %v406
        %v408 = vpop.f32.mrb[0].mxu0
        %v409 = vpop.f32.mrb[0].mxu0
        %v410 = vpop.f32.mrb[0].mxu0
        %411 = vdwg.mxu0
        %v412 = vmul.f32 %v288, %v288
        %v413 = vsel %vm312, %v412, 0.0
        %414 = vadd.xlane.f32.xlu0 %v413
        %v415 = vpop.xlane.xlu0 %414
        %v416 = vadd.f32 %v351, 1.0
        %v417 = vsub.f32 %v416, %v415
        %v418 = vlaneseq
        %v419 = vshrl.u32 %v418, 7
        %v420 = vsub.s32 0, %v419
        %v421 = vrot.slane %v290, %v420
        %v422 = vmul.f32 %v421, %v415
        %v423 = vadd.f32 %v416, %v422
        %v424 = vmax.f32 %v423, 1e-15
        %v425 = vrcp.pop %v424
        %v426 = vmul.f32 %v424, %v425
        %v427 = vsub.f32 2.0, %v426
        %v428 = vmul.f32 %v425, %v427
        %v429 = vmul.f32 %v417, %v417
        %v430 = vlaneseq
        %v431 = vshrl.u32 %v430, 7
        %v432 = vsub.s32 0, %v431
        %v433 = vrot.slane %v289, %v432
        %v434 = vmul.f32 %v429, %v433
        %v435 = vlaneseq
        %v436 = vshrl.u32 %v435, 7
        %v437 = vsub.s32 0, %v436
        %v438 = vrot.slane %v291, %v437
        %v439 = vmul.f32 %v417, %v438
        %v440 = vmul.f32 %v439, %v351
        %v441 = vsub.f32 %v434, %v440
        %v442 = vlaneseq
        %v443 = vshrl.u32 %v442, 7
        %v444 = vsub.s32 0, %v443
        %v445 = vrot.slane %v292, %v444
        %v446 = vmul.f32 %v445, %v415
        %v447 = vadd.f32 %v441, %v446
        %v448 = vmul.f32 %v428, %v428
        %v449 = vmul.f32 %v447, %v448
        %v450 = vmax.f32 %v449, 1e-15
        %v451 = vlaneseq
        %v452 = vshrl.u32 %v451, 7
        %v453 = vsub.s32 0, %v452
        %v454 = vrot.slane %v293, %v453
        %v455 = vmul.f32 %v417, %v454
        %v456 = vsub.f32 %v407, %v455
        %v457 = vmul.f32 %v456, %v428
        %v458 = vadd.f32 %v450, 1.0
        %v459 = vrcp.pop %v458
        %v460 = vmul.f32 %v458, %v459
        %v461 = vsub.f32 2.0, %v460
        %v462 = vmul.f32 %v459, %v461
        %v463 = vmul.f32 %v457, %v462
        %v464 = vmax.f32 %v463, -0.9999999
        %v465 = vmin.f32 %v464, 0.9999999
        %v466 = vand.u32 2147483647, %v465
        %vm467 = vcmp.lt.f32.partialorder %v465, 0.0
        %v468 = vsel %vm467, -1.0, 1.0
        %vm469 = vcmp.gt.f32.partialorder %v466, 0.5
        %v470 = vsub.f32 1.0, %v466
        %v471 = vmul.f32 %v470, 0.5
        %v472 = vrsqrt.pop %v471
        %v473 = vmul.f32 %v471, %v472
        %vm474 = vcmp.eq.f32.partialorder %v471, inf
        %v475 = vsel %vm474, %v471, %v473
        %vm476 = vcmp.eq.f32.partialorder %v471, 0.0
        %v477 = vand.u32 %v471, 2147483648
        %v478 = vsel %vm476, %v477, %v475
        %v479 = vmul.f32 %v466, %v466
        %v480 = vsel %vm469, %v471, %v479
        %v481 = vsel %vm469, %v478, %v466
        %v482 = vmul.f32 %v480, 0.0421632
        %v483 = vadd.f32 %v482, 0.024181312
        %v484 = vmul.f32 %v483, %v480
        %v485 = vadd.f32 %v484, 0.045470025
        %v486 = vmul.f32 %v485, %v480
        %v487 = vadd.f32 %v486, 0.074953005
        %v488 = vmul.f32 %v487, %v480
        %v489 = vadd.f32 %v488, 0.16666752
        %v490 = vmul.f32 %v489, %v480
        %v491 = vmul.f32 %v490, %v481
        %v492 = vadd.f32 %v491, %v481
        %v493 = vmul.f32 %v492, 2.0
        %v494 = vsub.f32 1.5707964, %v493
        %v495 = vsel %vm469, %v494, %v492
        %v496 = vmul.f32 %v468, %v495
        %v497 = vlaneseq
        %v498 = vshrl.u32 %v497, 7
        %v499 = vsub.s32 0, %v498
        %v500 = vrot.slane %v294, %v499
        %v501 = vmul.f32 %v496, %v500
        %502 = vst [vmem:[%s282] sm:$0xff] %v501
        %s503 = sand.u32 %s148, 1
        %s504 = scalar_lea.sflag [#allocation4], %s503
        %s505 = sand.u32 %s148, 1
        %s506 = smul.addr %s505, 8
        %s507 = scalar_lea.vmem [#allocation8], %s506
        // Predicated region
        $region49: #{tpu_custom_call.1} parent=35 // pred_check
          %p508 = pneg %p158
        $region50: #{tpu_custom_call.1} parent=35 // pred_check_branch
          %510 = sbr.rel (%p508) target = $region52
        $region51: #{tpu_custom_call.1} parent=35 // pred_region
          %s512 = ssub.s32 128, 128
          %513 = vsyncadd %s504, %s512
          %s514 = sadd.s32 %s27, %s26
          %s515 = smul.addr %s514, 128
          %s516 = scalar_lea.hbm %s4, %s515
          %s518 = sshll.u32 %s507, 4
          %s519 = int_to_ptr.vmem [resolvable:$true] %s518
          %521 = dma.vmem_to_hbm [thread:$0]  %s519, 128, %s516, %s504
        $region52: #{tpu_custom_call.1} parent=35 // pred_fallthru
          _
      $region36: #{tpu_custom_call.1} parent=5 // pred_fallthru
        _
      %p522 = scmp.le.s32.totalorder 2, %s17
      // Predicated region
      $region53: #{tpu_custom_call.1} parent=5 // pred_check
        %p523 = pneg %p522
      $region54: #{tpu_custom_call.1} parent=5 // pred_check_branch
        %525 = sbr.rel (%p523) target = $region56
      $region55: #{tpu_custom_call.1} parent=5 // pred_region
        %s526 = ssub.s32 %s17, 2
        // Predicated region
        $region57: #{tpu_custom_call.1} parent=55 // pred_check
          %p527 = pneg %p164
        $region58: #{tpu_custom_call.1} parent=55 // pred_check_branch
          %529 = sbr.rel (%p527) target = $region60
        $region59: #{tpu_custom_call.1} parent=55 // pred_region
          %s530 = sand.u32 %s149, 1
          %s531 = scalar_lea.sflag [#allocation4], %s530
          %s532 = sand.u32 %s149, 1
          %s533 = smul.addr %s532, 8
          %s534 = scalar_lea.vmem [#allocation8], %s533
          %535 = dma.done %s531, 128
        $region60: #{tpu_custom_call.1} parent=55 // pred_fallthru
          _
      $region56: #{tpu_custom_call.1} parent=5 // pred_fallthru
        _
    $region6: #{tpu_custom_call.1} parent=1 // loop_footer
      %s21 = sadd.s32 1, %s17
    $region7: #{tpu_custom_call.1} parent=1 // loop_footer_branch
      %16 = sbr.rel target = $region3
    $region8: #{tpu_custom_call.1} parent=1 // loop_exit
      _
    %536 = vsyncpa [#allocation3], 1
    %s537 = scalar_lea.sflag [#allocation3], 1
    %538 = vsyncpa %s537, 1
    %539 = vsyncpa [#allocation6], 1
    %540 = vsyncpa [#allocation4], 1
    %s541 = scalar_lea.sflag [#allocation4], 1
    %542 = vsyncpa %s541, 1

</llo_original>
